<compile_context>
chip_gen: v7x
topology: tpu7x:2x2x1
jax: 0.10.0
libtpu: 0.0.40
codegen_flags: <defaults>
</compile_context>

<pallas_src>
import functools

import jax
import jax.numpy as jnp
from jax import lax
from jax.experimental import pallas as pl
from jax.experimental.pallas import tpu as pltpu

SOBEL_LAMBDA = 0.5
L1_LAMBDA = 0.5
EPS = 1e-6

_TB_CAP = 64                            # max images per grid step
_TEMP_SLABS = 10                        # live f32 chunk-sized stencil temporaries (conservative)
_CHUNK_TEMP_BUDGET = 2 * 1024 * 1024    # target bytes of per-chunk temporaries kept live
_VMEM_FRACTION = 0.75                   # scoped-vmem limit as a fraction of physical VMEM
_VMEM_USE_FRACTION = 0.8                # fraction of the scoped limit we plan blocks against


def _cdiv(a, b):
    return -(-a // b)


def _largest_divisor_at_most(n, cap):
    for d in range(min(n, max(cap, 1)), 0, -1):
        if n % d == 0:
            return d
    return 1


def _tpu_vmem_and_cores():
    """Best-effort (VMEM bytes per core, TensorCores per device)."""
    vmem = 64 * 1024 * 1024        # conservative fallback: smallest of v5e/v6e/v7x
    cores = 1
    try:
        vmem = int(pltpu.get_tpu_info().vmem_capacity_bytes)
    except Exception:
        pass
    try:
        kind = jax.devices()[0].device_kind.lower()
        if any(tag in kind for tag in ("v4", "v5p", "v7", "7x")):
            cores = 2              # megacore / dual-TensorCore generations
    except Exception:
        pass
    return vmem, cores


def _sobel_mag(x, eps):
    """Sobel gradient magnitude of a (C, H, W) f32 chunk, 'valid' -> (C, H-2, W-2).

    Separable form: the 3x3 Sobel kernels factor into a [-1, 0, 1] difference and
    a [1, 2, 1] smoothing, so the W-diff / H-diff intermediates are shared between
    gx and gy (cross-correlation, matching F.conv2d).
    """
    d_w = x[:, :, 2:] - x[:, :, :-2]                                  # (C, H,   W-2)
    gx = d_w[:, :-2, :] + 2.0 * d_w[:, 1:-1, :] + d_w[:, 2:, :]       # (C, H-2, W-2)
    d_h = x[:, 2:, :] - x[:, :-2, :]                                  # (C, H-2, W)
    gy = d_h[:, :, :-2] + 2.0 * d_h[:, :, 1:-1] + d_h[:, :, 2:]       # (C, H-2, W-2)
    return jnp.sqrt(gx * gx + gy * gy + eps)


def _l1_sobel_kernel(x_ref, t_ref, out_ref, acc_ref, *,
                     eps, chunk, n_chunks, sobel_scale, l1_scale):
    H, W = acc_ref.shape
    b = pl.program_id(1)  # reduction axis within this split (last grid axis)

    @pl.when(b == 0)
    def _init():
        acc_ref[...] = jnp.zeros_like(acc_ref)

    def accumulate_chunk(base):
        # Small per-chunk working set: the f32 upcast and all stencil
        # intermediates stay chunk-sized (vreg-friendly) instead of TB-sized.
        x = x_ref[pl.ds(base, chunk), :, :].astype(jnp.float32)       # (chunk, H, W)
        t = t_ref[pl.ds(base, chunk), :, :].astype(jnp.float32)
        g_x = _sobel_mag(x, eps)
        g_t = _sobel_mag(t, eps)
        # Sum over the chunk (leading/slab) axis is pure VALU adds; the
        # lambda/mean scales are folded in so the accumulator directly holds
        # partial loss contributions.
        sobel_c = jnp.sum(jnp.abs(g_x - g_t), axis=0) * sobel_scale   # (H-2, W-2)
        l1_c = jnp.sum(jnp.abs(x - t), axis=0) * l1_scale             # (H, W)
        acc_ref[...] += l1_c
        acc_ref[: H - 2, : W - 2] += sobel_c

    if n_chunks == 1:
        accumulate_chunk(0)
    else:
        def body(i, carry):
            accumulate_chunk(pl.multiple_of(i * chunk, chunk))
            return carry

        lax.fori_loop(0, n_chunks, body, 0, unroll=min(n_chunks, 4))

    @pl.when(b == pl.num_programs(1) - 1)
    def _finalize():
        # The single XLU-heavy cross-lane/sublane reduction, once per split.
        out_ref[...] = jnp.sum(acc_ref[...], keepdims=True)


def l1_sobel_loss(inp, tgt, sobel_lambda=SOBEL_LAMBDA, l1_lambda=L1_LAMBDA, eps=EPS):
    assert inp.shape == tgt.shape
    N, C, H, W = inp.shape
    assert C == 1, "Sobel weight (2, 1, 3, 3) implies a single input channel"
    assert H >= 3 and W >= 3, "Sobel 'valid' conv needs H, W >= 3"

    x = inp.reshape(N, H, W)
    t = tgt.reshape(N, H, W)

    vmem_cap, n_cores = _tpu_vmem_and_cores()
    vmem_limit = int(_VMEM_FRACTION * vmem_cap)
    usable = int(_VMEM_USE_FRACTION * vmem_limit)

    # Split over a leading "parallel" axis only where it can pay (dual-TC chips)
    # and only when it divides N (no extra zero-padded HBM traffic on v5e/v6e).
    num_splits = 2 if (n_cores >= 2 and N >= 2 and N % 2 == 0) else 1
    per_split = N // num_splits

    in_itemsize = jnp.dtype(inp.dtype).itemsize
    img_in_bytes = H * W * in_itemsize           # one image per input per pipeline buffer
    img_tmp_bytes = _TEMP_SLABS * H * W * 4      # f32 upcast + live stencil temporaries
    acc_bytes = H * W * 4                        # merged accumulator scratch

    # Inner chunk size: bounds the per-iteration f32 working set.
    chunk_cap = max(1, min(_TB_CAP, _CHUNK_TEMP_BUDGET // img_tmp_bytes))
    # Outer block size: 2 inputs x 2 pipeline buffers + accumulator + temporaries.
    inputs_budget = usable - acc_bytes - chunk_cap * img_tmp_bytes
    tb_from_vmem = max(1, inputs_budget // (2 * 2 * img_in_bytes))
    tb = int(min(per_split, _TB_CAP, tb_from_vmem))
    chunk = _largest_divisor_at_most(tb, chunk_cap)
    n_chunks = tb // chunk
    nb = _cdiv(per_split, tb)
    n_padded = num_splits * nb * tb

    if n_padded != N:
        # Zero padding is exact: |0 - 0| = 0 and both Sobel magnitudes of an
        # all-zero image are sqrt(eps), so padded images contribute nothing.
        pad = ((0, n_padded - N), (0, 0), (0, 0))
        x = jnp.pad(x, pad)
        t = jnp.pad(t, pad)

    # F.l1_loss uses mean reduction; divisors use the original N. Folding the
    # lambda/mean factors per-chunk lets both terms share one accumulator.
    sobel_scale = float(sobel_lambda) / float(N * (H - 2) * (W - 2))
    l1_scale = float(l1_lambda) / float(N * C * H * W)

    kernel = functools.partial(
        _l1_sobel_kernel, eps=float(eps), chunk=chunk, n_chunks=n_chunks,
        sobel_scale=sobel_scale, l1_scale=l1_scale)

    parts = pl.pallas_call(
        kernel,
        out_shape=jax.ShapeDtypeStruct((num_splits, 1), jnp.float32),
        grid_spec=pltpu.PrefetchScalarGridSpec(
            num_scalar_prefetch=0,
            grid=(num_splits, nb),
            in_specs=[
                pl.BlockSpec((tb, H, W), lambda c, b: (c * nb + b, 0, 0)),
                pl.BlockSpec((tb, H, W), lambda c, b: (c * nb + b, 0, 0)),
            ],
            out_specs=pl.BlockSpec((1, 1), lambda c, b: (c, 0)),
            scratch_shapes=[
                pltpu.VMEM((H, W), jnp.float32),   # merged scaled partial sums
            ],
        ),
        compiler_params=pltpu.CompilerParams(
            dimension_semantics=("parallel", "arbitrary"),
            vmem_limit_bytes=vmem_limit,
        ),
    )(x, t)

    # Combine per-split partials; scales are already folded, so this IS the loss.
    return jnp.sum(parts)


def _reference_loss(inp, tgt, sobel_lambda, l1_lambda, eps):
    """Pure-JAX reference using lax.conv (same cross-correlation as F.conv2d)."""
    kx = jnp.array([[-1.0, 0.0, 1.0], [-2.0, 0.0, 2.0], [-1.0, 0.0, 1.0]], jnp.float32)
    kernel = jnp.stack([kx, kx.T])[:, None]  # (2, 1, 3, 3)

    def sobel_grad(img):
        g = jax.lax.conv_general_dilated(
            img.astype(jnp.float32), kernel, window_strides=(1, 1),
            padding="VALID", dimension_numbers=("NCHW", "OIHW", "NCHW"))
        return jnp.sqrt(g[:, 0] ** 2 + g[:, 1] ** 2 + eps)

    grad_loss = jnp.mean(jnp.abs(sobel_grad(inp) - sobel_grad(tgt)))
    l1_loss = jnp.mean(jnp.abs(inp.astype(jnp.float32) - tgt.astype(jnp.float32)))
    return sobel_lambda * grad_loss + l1_lambda * l1_loss


if __name__ == "__main__":
    key = jax.random.PRNGKey(0)
    k1, k2 = jax.random.split(key)
    inp = jax.random.normal(k1, (2, 1, 16, 16), dtype=jnp.float32)
    tgt = jax.random.normal(k2, (2, 1, 16, 16), dtype=jnp.float32)

    loss = l1_sobel_loss(inp, tgt)
    jax.block_until_ready(loss)

    ref = _reference_loss(inp, tgt, SOBEL_LAMBDA, L1_LAMBDA, EPS)
    jax.block_until_ready(ref)

    if abs(float(loss) - float(ref)) > 1e-5 * max(1.0, abs(float(ref))):
        raise AssertionError(f"mismatch: pallas={float(loss)} ref={float(ref)}")

    print("KERNEL_OK")
</pallas_src>

<mosaic_0001>
module attributes {stable_mosaic.version = 11 : i64} {
  func.func @_l1_sobel_kernel(%arg0: i32, %arg1: i32, %arg2: memref<2x16x16xf32, #tpu.memory_space<vmem>>, %arg3: memref<2x16x16xf32, #tpu.memory_space<vmem>>, %arg4: memref<1x1xf32, #tpu.memory_space<vmem>>, %arg5: memref<16x16xf32, #tpu.memory_space<vmem>>) attributes {dimension_semantics = [#tpu.dimension_semantics<parallel>, #tpu.dimension_semantics<arbitrary>], iteration_bounds = array<i64: 1, 1>, scalar_prefetch = 0 : i64, scratch_operands = 1 : i64, tpu.core_type = #tpu.core_type<tc>, window_params = [{transform_indices = @transform_0, window_bounds = array<i64: 2, 16, 16>}, {transform_indices = @transform_1, window_bounds = array<i64: 2, 16, 16>}, {transform_indices = @transform_2, window_bounds = array<i64: 1, 1>}]} {
    %c0_i32 = arith.constant 0 : i32
    %0 = arith.cmpi eq, %arg1, %c0_i32 : i32
    %1 = arith.extui %0 : i1 to i32
    %c0_i32_0 = arith.constant 0 : i32
    %2 = arith.cmpi ne, %1, %c0_i32_0 : i32
    scf.if %2 {
      %cst_25 = arith.constant 0.000000e+00 : f32
      %76 = vector.broadcast %cst_25 : f32 to vector<16x16xf32>
      %c0_26 = arith.constant 0 : index
      %c0_27 = arith.constant 0 : index
      %77 = vector.load %arg5[%c0_26, %c0_27] : memref<16x16xf32, #tpu.memory_space<vmem>>, vector<16x16xf32>
      tpu.vector_store %arg5[%c0_26, %c0_27], %76 {strides = array<i32>} : memref<16x16xf32, #tpu.memory_space<vmem>>, vector<16x16xf32>,
    } else {
    }
    %c0 = arith.constant 0 : index
    %c0_1 = arith.constant 0 : index
    %c0_2 = arith.constant 0 : index
    %3 = vector.load %arg2[%c0, %c0_1, %c0_2] : memref<2x16x16xf32, #tpu.memory_space<vmem>>, vector<2x16x16xf32>
    %c0_3 = arith.constant 0 : index
    %c0_4 = arith.constant 0 : index
    %c0_5 = arith.constant 0 : index
    %4 = vector.load %arg3[%c0_3, %c0_4, %c0_5] : memref<2x16x16xf32, #tpu.memory_space<vmem>>, vector<2x16x16xf32>
    %5 = vector.extract_strided_slice %3 {offsets = [0, 0, 2], sizes = [2, 16, 14], strides = [1, 1, 1]} : vector<2x16x16xf32> to vector<2x16x14xf32>
    %6 = vector.extract_strided_slice %3 {offsets = [0, 0, 0], sizes = [2, 16, 14], strides = [1, 1, 1]} : vector<2x16x16xf32> to vector<2x16x14xf32>
    %7 = arith.subf %5, %6 : vector<2x16x14xf32>
    %8 = vector.extract_strided_slice %7 {offsets = [0, 0, 0], sizes = [2, 14, 14], strides = [1, 1, 1]} : vector<2x16x14xf32> to vector<2x14x14xf32>
    %9 = vector.extract_strided_slice %7 {offsets = [0, 1, 0], sizes = [2, 14, 14], strides = [1, 1, 1]} : vector<2x16x14xf32> to vector<2x14x14xf32>
    %cst = arith.constant 2.000000e+00 : f32
    %10 = vector.broadcast %cst : f32 to vector<2x14x14xf32>
    %11 = arith.mulf %10, %9 : vector<2x14x14xf32>
    %12 = arith.addf %8, %11 : vector<2x14x14xf32>
    %13 = vector.extract_strided_slice %7 {offsets = [0, 2, 0], sizes = [2, 14, 14], strides = [1, 1, 1]} : vector<2x16x14xf32> to vector<2x14x14xf32>
    %14 = arith.addf %12, %13 : vector<2x14x14xf32>
    %15 = vector.extract_strided_slice %3 {offsets = [0, 2, 0], sizes = [2, 14, 16], strides = [1, 1, 1]} : vector<2x16x16xf32> to vector<2x14x16xf32>
    %16 = vector.extract_strided_slice %3 {offsets = [0, 0, 0], sizes = [2, 14, 16], strides = [1, 1, 1]} : vector<2x16x16xf32> to vector<2x14x16xf32>
    %17 = arith.subf %15, %16 : vector<2x14x16xf32>
    %18 = vector.extract_strided_slice %17 {offsets = [0, 0, 0], sizes = [2, 14, 14], strides = [1, 1, 1]} : vector<2x14x16xf32> to vector<2x14x14xf32>
    %19 = vector.extract_strided_slice %17 {offsets = [0, 0, 1], sizes = [2, 14, 14], strides = [1, 1, 1]} : vector<2x14x16xf32> to vector<2x14x14xf32>
    %cst_6 = arith.constant 2.000000e+00 : f32
    %20 = vector.broadcast %cst_6 : f32 to vector<2x14x14xf32>
    %21 = arith.mulf %20, %19 : vector<2x14x14xf32>
    %22 = arith.addf %18, %21 : vector<2x14x14xf32>
    %23 = vector.extract_strided_slice %17 {offsets = [0, 0, 2], sizes = [2, 14, 14], strides = [1, 1, 1]} : vector<2x14x16xf32> to vector<2x14x14xf32>
    %24 = arith.addf %22, %23 : vector<2x14x14xf32>
    %25 = arith.mulf %14, %14 : vector<2x14x14xf32>
    %26 = arith.mulf %24, %24 : vector<2x14x14xf32>
    %27 = arith.addf %25, %26 : vector<2x14x14xf32>
    %cst_7 = arith.constant 9.99999997E-7 : f32
    %28 = vector.broadcast %cst_7 : f32 to vector<2x14x14xf32>
    %29 = arith.addf %27, %28 : vector<2x14x14xf32>
    %30 = math.sqrt %29 : vector<2x14x14xf32>
    %31 = vector.extract_strided_slice %4 {offsets = [0, 0, 2], sizes = [2, 16, 14], strides = [1, 1, 1]} : vector<2x16x16xf32> to vector<2x16x14xf32>
    %32 = vector.extract_strided_slice %4 {offsets = [0, 0, 0], sizes = [2, 16, 14], strides = [1, 1, 1]} : vector<2x16x16xf32> to vector<2x16x14xf32>
    %33 = arith.subf %31, %32 : vector<2x16x14xf32>
    %34 = vector.extract_strided_slice %33 {offsets = [0, 0, 0], sizes = [2, 14, 14], strides = [1, 1, 1]} : vector<2x16x14xf32> to vector<2x14x14xf32>
    %35 = vector.extract_strided_slice %33 {offsets = [0, 1, 0], sizes = [2, 14, 14], strides = [1, 1, 1]} : vector<2x16x14xf32> to vector<2x14x14xf32>
    %cst_8 = arith.constant 2.000000e+00 : f32
    %36 = vector.broadcast %cst_8 : f32 to vector<2x14x14xf32>
    %37 = arith.mulf %36, %35 : vector<2x14x14xf32>
    %38 = arith.addf %34, %37 : vector<2x14x14xf32>
    %39 = vector.extract_strided_slice %33 {offsets = [0, 2, 0], sizes = [2, 14, 14], strides = [1, 1, 1]} : vector<2x16x14xf32> to vector<2x14x14xf32>
    %40 = arith.addf %38, %39 : vector<2x14x14xf32>
    %41 = vector.extract_strided_slice %4 {offsets = [0, 2, 0], sizes = [2, 14, 16], strides = [1, 1, 1]} : vector<2x16x16xf32> to vector<2x14x16xf32>
    %42 = vector.extract_strided_slice %4 {offsets = [0, 0, 0], sizes = [2, 14, 16], strides = [1, 1, 1]} : vector<2x16x16xf32> to vector<2x14x16xf32>
    %43 = arith.subf %41, %42 : vector<2x14x16xf32>
    %44 = vector.extract_strided_slice %43 {offsets = [0, 0, 0], sizes = [2, 14, 14], strides = [1, 1, 1]} : vector<2x14x16xf32> to vector<2x14x14xf32>
    %45 = vector.extract_strided_slice %43 {offsets = [0, 0, 1], sizes = [2, 14, 14], strides = [1, 1, 1]} : vector<2x14x16xf32> to vector<2x14x14xf32>
    %cst_9 = arith.constant 2.000000e+00 : f32
    %46 = vector.broadcast %cst_9 : f32 to vector<2x14x14xf32>
    %47 = arith.mulf %46, %45 : vector<2x14x14xf32>
    %48 = arith.addf %44, %47 : vector<2x14x14xf32>
    %49 = vector.extract_strided_slice %43 {offsets = [0, 0, 2], sizes = [2, 14, 14], strides = [1, 1, 1]} : vector<2x14x16xf32> to vector<2x14x14xf32>
    %50 = arith.addf %48, %49 : vector<2x14x14xf32>
    %51 = arith.mulf %40, %40 : vector<2x14x14xf32>
    %52 = arith.mulf %50, %50 : vector<2x14x14xf32>
    %53 = arith.addf %51, %52 : vector<2x14x14xf32>
    %cst_10 = arith.constant 9.99999997E-7 : f32
    %54 = vector.broadcast %cst_10 : f32 to vector<2x14x14xf32>
    %55 = arith.addf %53, %54 : vector<2x14x14xf32>
    %56 = math.sqrt %55 : vector<2x14x14xf32>
    %57 = arith.subf %30, %56 : vector<2x14x14xf32>
    %58 = math.absf %57 : vector<2x14x14xf32>
    %cst_11 = arith.constant dense<0.000000e+00> : vector<14x14xf32>
    %59 = vector.multi_reduction <add>, %58, %cst_11 [0] : vector<2x14x14xf32> to vector<14x14xf32>
    %cst_12 = arith.constant 0.00127551018 : f32
    %60 = vector.broadcast %cst_12 : f32 to vector<14x14xf32>
    %61 = arith.mulf %59, %60 : vector<14x14xf32>
    %62 = arith.subf %3, %4 : vector<2x16x16xf32>
    %63 = math.absf %62 : vector<2x16x16xf32>
    %cst_13 = arith.constant dense<0.000000e+00> : vector<16x16xf32>
    %64 = vector.multi_reduction <add>, %63, %cst_13 [0] : vector<2x16x16xf32> to vector<16x16xf32>
    %cst_14 = arith.constant 9.765625E-4 : f32
    %65 = vector.broadcast %cst_14 : f32 to vector<16x16xf32>
    %66 = arith.mulf %64, %65 : vector<16x16xf32>
    %c0_15 = arith.constant 0 : index
    %c0_16 = arith.constant 0 : index
    %67 = vector.load %arg5[%c0_15, %c0_16] : memref<16x16xf32, #tpu.memory_space<vmem>>, vector<16x16xf32>
    %68 = arith.addf %67, %66 : vector<16x16xf32>
    %c0_17 = arith.constant 0 : index
    %c0_18 = arith.constant 0 : index
    %69 = vector.load %arg5[%c0_17, %c0_18] : memref<16x16xf32, #tpu.memory_space<vmem>>, vector<16x16xf32>
    tpu.vector_store %arg5[%c0_17, %c0_18], %68 {strides = array<i32>} : memref<16x16xf32, #tpu.memory_space<vmem>>, vector<16x16xf32>,
    %c0_19 = arith.constant 0 : index
    %c0_20 = arith.constant 0 : index
    %70 = vector.load %arg5[%c0_19, %c0_20] : memref<16x16xf32, #tpu.memory_space<vmem>>, vector<14x14xf32>
    %71 = arith.addf %70, %61 : vector<14x14xf32>
    %c0_21 = arith.constant 0 : index
    %c0_22 = arith.constant 0 : index
    %72 = vector.load %arg5[%c0_21, %c0_22] : memref<16x16xf32, #tpu.memory_space<vmem>>, vector<14x14xf32>
    tpu.vector_store %arg5[%c0_21, %c0_22], %71 {strides = array<i32>} : memref<16x16xf32, #tpu.memory_space<vmem>>, vector<14x14xf32>,
    %c0_i32_23 = arith.constant 0 : i32
    %73 = arith.cmpi eq, %arg1, %c0_i32_23 : i32
    %74 = arith.extui %73 : i1 to i32
    %c0_i32_24 = arith.constant 0 : i32
    %75 = arith.cmpi ne, %74, %c0_i32_24 : i32
    scf.if %75 {
      %c0_25 = arith.constant 0 : index
      %c0_26 = arith.constant 0 : index
      %76 = vector.load %arg5[%c0_25, %c0_26] : memref<16x16xf32, #tpu.memory_space<vmem>>, vector<16x16xf32>
      %77 = vector.shape_cast %76 : vector<16x16xf32> to vector<1x16x16xf32>
      %cst_27 = arith.constant dense<0.000000e+00> : vector<1xf32>
      %78 = vector.multi_reduction <add>, %77, %cst_27 [1, 2] : vector<1x16x16xf32> to vector<1xf32>
      %79 = vector.shape_cast %78 : vector<1xf32> to vector<1x1x1xf32>
      %80 = vector.extract %79[0, 0, 0] : f32 from vector<1x1x1xf32>
      %81 = vector.broadcast %80 : f32 to vector<1x1xf32>
      %c0_28 = arith.constant 0 : index
      %c0_29 = arith.constant 0 : index
      %82 = vector.load %arg4[%c0_28, %c0_29] : memref<1x1xf32, #tpu.memory_space<vmem>>, vector<1x1xf32>
      tpu.vector_store %arg4[%c0_28, %c0_29], %81 {strides = array<i32>} : memref<1x1xf32, #tpu.memory_space<vmem>>, vector<1x1xf32>,
    } else {
    }
    return
  }
  func.func @transform_0(%arg0: i32, %arg1: i32) -> (i32, i32, i32) {
    %c1_i32 = arith.constant 1 : i32
    %0 = arith.muli %arg0, %c1_i32 : i32
    %1 = arith.addi %0, %arg1 : i32
    %c0_i32 = arith.constant 0 : i32
    %c0_i32_0 = arith.constant 0 : i32
    %c0_i32_1 = arith.constant 0 : i32
    return %1, %c0_i32, %c0_i32_0 : i32, i32, i32
  }
  func.func @transform_1(%arg0: i32, %arg1: i32) -> (i32, i32, i32) {
    %c1_i32 = arith.constant 1 : i32
    %0 = arith.muli %arg0, %c1_i32 : i32
    %1 = arith.addi %0, %arg1 : i32
    %c0_i32 = arith.constant 0 : i32
    %c0_i32_0 = arith.constant 0 : i32
    %c0_i32_1 = arith.constant 0 : i32
    return %1, %c0_i32, %c0_i32_0 : i32, i32, i32
  }
  func.func @transform_2(%arg0: i32, %arg1: i32) -> (i32, i32) {
    %c0_i32 = arith.constant 0 : i32
    %c0_i32_0 = arith.constant 0 : i32
    return %arg0, %c0_i32 : i32, i32
  }
}

</mosaic_0001>

<llo_original>
// kernel: tpu_custom_call.1
$region0: #{tpu_custom_call.1}
  #allocation0 [shape = 'u32[]', space=smem, size = 0x4, offset = 0x4, fixed_abs, tag = 'smem constant byte address 0x4 - core index']
  #allocation1 [shape = 'u32[144,128]{1,0:T(1,128)}', space=vmem, size = 0x12000, scoped, tag = 'internal scratch']
  #allocation2 [shape = 'f32[16,16]{1,0:T(8,128)}', space=vmem, size = 0x2000, scoped, tag = 'scratch operand']
  %s0 = inlined_call_operand.hbm [shape: f32[2,16,16], index: 0, kind: input, shape index: {}]
  %s1 = inlined_call_operand.hbm [shape: f32[2,16,16], index: 1, kind: input, shape index: {}]
  %s2 = inlined_call_operand.hbm [shape: f32[1,1], index: 2, kind: output, shape index: {}]
  %s3 = sld [smem:[#allocation0]]
  $region34: #{tpu_custom_call.1} parent=0
    _
  %s5 = ssub.s32 1, %s3
  %s6 = scalar_select 0, %s5, %s3
  $region1: #{tpu_custom_call.1} parent=0
    #allocation3 [shape = 'u8[16384]{0}', space=vmem, size = 0x4000, scoped, tag = 'input window, operand 0, single buffered']
    #allocation4 [shape = 's32[1]{0}', space=sflag, size = 0x4, scoped, tag = 'scoped memory for tpu_custom_call.1']
    #allocation5 [shape = 's32[1]{0}', space=sflag, size = 0x4, scoped, tag = 'scoped memory for tpu_custom_call.1']
    #allocation6 [shape = 'u8[16384]{0}', space=vmem, size = 0x4000, scoped, tag = 'input window, operand 1, single buffered']
    #allocation7 [shape = 's32[1]{0}', space=sflag, size = 0x4, scoped, tag = 'scoped memory for tpu_custom_call.1']
    #allocation8 [shape = 'u8[512]{0}', space=vmem, size = 0x400, scoped, tag = 'output window, operand 0, single buffered']
    %7 = vsyncpa [#allocation4], 0
    %8 = vsyncpa [#allocation7], 0
    %9 = vsyncpa [#allocation5], 0
    // Predicated region
    $region2: #{tpu_custom_call.1} parent=1 // pred_check
      _
    $region3: #{tpu_custom_call.1} parent=1 // pred_check_branch
      %11 = sbr.rel (0) target = $region5
    $region4: #{tpu_custom_call.1} parent=1 // pred_region
      %s12 = sadd.s32 0, 0
      %s13 = smul.u32 2, %s12
      %s15 = ssub.s32 512, 512
      %16 = vsyncadd [#allocation4], %s15
      %s17 = smul.addr %s13, 2
      %s18 = smul.addr %s17, 128
      %s19 = scalar_lea.hbm %s0, %s18
      %s20 = sshll.u32 [#allocation3], 4
      %s21 = int_to_ptr.vmem [resolvable:$true] %s20
      %26 = dma.hbm_to_vmem [thread:$0]  %s19, 512, %s21, [#allocation4], 128, 128, 8
    $region5: #{tpu_custom_call.1} parent=1 // pred_fallthru
      _
    // Predicated region
    $region6: #{tpu_custom_call.1} parent=1 // pred_check
      _
    $region7: #{tpu_custom_call.1} parent=1 // pred_check_branch
      %28 = sbr.rel (0) target = $region9
    $region8: #{tpu_custom_call.1} parent=1 // pred_region
      %s29 = sadd.s32 0, 0
      %s30 = smul.u32 2, %s29
      %s32 = ssub.s32 512, 512
      %33 = vsyncadd [#allocation7], %s32
      %s34 = smul.addr %s30, 2
      %s35 = smul.addr %s34, 128
      %s36 = scalar_lea.hbm %s1, %s35
      %s37 = sshll.u32 [#allocation6], 4
      %s38 = int_to_ptr.vmem [resolvable:$true] %s37
      %43 = dma.hbm_to_vmem [thread:$0]  %s36, 512, %s38, [#allocation7], 128, 128, 8
    $region9: #{tpu_custom_call.1} parent=1 // pred_fallthru
      _
    // Predicated region
    $region10: #{tpu_custom_call.1} parent=1 // pred_check
      _
    $region11: #{tpu_custom_call.1} parent=1 // pred_check_branch
      %45 = sbr.rel (0) target = $region13
    $region12: #{tpu_custom_call.1} parent=1 // pred_region
      %46 = dma.done [#allocation4], 512
    $region13: #{tpu_custom_call.1} parent=1 // pred_fallthru
      _
    // Predicated region
    $region14: #{tpu_custom_call.1} parent=1 // pred_check
      _
    $region15: #{tpu_custom_call.1} parent=1 // pred_check_branch
      %48 = sbr.rel (0) target = $region17
    $region16: #{tpu_custom_call.1} parent=1 // pred_region
      %49 = dma.done [#allocation7], 512
    $region17: #{tpu_custom_call.1} parent=1 // pred_fallthru
      _
    %s50 = sadd.s32 0, 0
    %s51 = smul.u32 2, %s50
    %s52 = sadd.s32 0, 0
    %s53 = smul.u32 2, %s52
    %p54 = scmp.eq.s32.totalorder 0, 0
    // Predicated region
    $region18: #{tpu_custom_call.1} parent=1 // pred_check
      %p55 = pneg %p54
    $region19: #{tpu_custom_call.1} parent=1 // pred_check_branch
      %57 = sbr.rel (%p55) target = $region21
    $region20: #{tpu_custom_call.1} parent=1 // pred_region
      %vm58 = vcmask 130048
      %59 = vst.msk [vmem:[#allocation2] sm:$0xff] %vm58, 0.0
      %60 = vst.msk [vmem:[#allocation2 + $0x8] sm:$0xff] %vm58, 0.0
    $region21: #{tpu_custom_call.1} parent=1 // pred_fallthru
      _
    %v61 = vld [vmem:[#allocation3] sm:$0xff]
    %v62 = vld [vmem:[#allocation3 + $0x8] sm:$0xff]
    %v63 = vld [vmem:[#allocation3 + $0x10] sm:$0xff]
    %v64 = vld [vmem:[#allocation3 + $0x18] sm:$0xff]
    %v65 = vld [vmem:[#allocation6] sm:$0xff]
    %v66 = vld [vmem:[#allocation6 + $0x8] sm:$0xff]
    %v67 = vld [vmem:[#allocation6 + $0x10] sm:$0xff]
    %v68 = vld [vmem:[#allocation6 + $0x18] sm:$0xff]
    %73 = vrot.lane.b32.xlu0 %v61, 2
    %v74 = vpop.permute.xlu0 %73
    %75 = vrot.lane.b32.xlu0 %v62, 2
    %v76 = vpop.permute.xlu0 %75
    %77 = vrot.lane.b32.xlu0 %v63, 2
    %v78 = vpop.permute.xlu0 %77
    %79 = vrot.lane.b32.xlu0 %v64, 2
    %v80 = vpop.permute.xlu0 %79
    %v85 = vsub.f32 %v61, %v74
    %v86 = vsub.f32 %v62, %v76
    %v87 = vsub.f32 %v63, %v78
    %v88 = vsub.f32 %v64, %v80
    %v89 = vmul.f32 %v85, 2.0
    %v90 = vmul.f32 %v86, 2.0
    %v91 = vmul.f32 %v87, 2.0
    %v92 = vmul.f32 %v88, 2.0
    %vm97 = vcmask 1046528
    %v98 = vrot.slane %v89, 1
    %v99 = vrot.slane %v90, 1
    %v100 = vsel %vm97, %v98, %v99
    %v101 = vrot.slane %v91, 1
    %v102 = vrot.slane %v92, 1
    %v103 = vsel %vm97, %v101, %v102
    %v108 = vadd.f32 %v85, %v100
    %v109 = vadd.f32 %v86, %v99
    %v110 = vadd.f32 %v87, %v103
    %v111 = vadd.f32 %v88, %v102
    %vm116 = vcmask 1045504
    %v117 = vrot.slane %v85, 2
    %v118 = vrot.slane %v86, 2
    %v119 = vsel %vm116, %v117, %v118
    %v120 = vrot.slane %v87, 2
    %v121 = vrot.slane %v88, 2
    %v122 = vsel %vm116, %v120, %v121
    %v127 = vadd.f32 %v108, %v119
    %v128 = vadd.f32 %v109, %v118
    %v129 = vadd.f32 %v110, %v122
    %v130 = vadd.f32 %v111, %v121
    %vm131 = vcmask 1041408
    %v132 = vrot.slane %v61, 6
    %v133 = vrot.slane %v62, 6
    %v134 = vsel %vm131, %v132, %v133
    %v135 = vrot.slane %v63, 6
    %v136 = vrot.slane %v64, 6
    %v137 = vsel %vm131, %v135, %v136
    %v142 = vsub.f32 %v61, %v132
    %v143 = vsub.f32 %v62, %v134
    %v144 = vsub.f32 %v63, %v135
    %v145 = vsub.f32 %v64, %v137
    %v146 = vmul.f32 %v142, 2.0
    %v147 = vmul.f32 %v143, 2.0
    %v148 = vmul.f32 %v144, 2.0
    %v149 = vmul.f32 %v145, 2.0
    %154 = vrot.lane.b32.xlu0 %v146, 127
    %v155 = vpop.permute.xlu0 %154
    %156 = vrot.lane.b32.xlu0 %v147, 127
    %v157 = vpop.permute.xlu0 %156
    %158 = vrot.lane.b32.xlu0 %v148, 127
    %v159 = vpop.permute.xlu0 %158
    %160 = vrot.lane.b32.xlu0 %v149, 127
    %v161 = vpop.permute.xlu0 %160
    %v166 = vadd.f32 %v142, %v155
    %v167 = vadd.f32 %v143, %v157
    %v168 = vadd.f32 %v144, %v159
    %v169 = vadd.f32 %v145, %v161
    %174 = vrot.lane.b32.xlu0 %v142, 126
    %v175 = vpop.permute.xlu0 %174
    %176 = vrot.lane.b32.xlu0 %v143, 126
    %v177 = vpop.permute.xlu0 %176
    %178 = vrot.lane.b32.xlu0 %v144, 126
    %v179 = vpop.permute.xlu0 %178
    %180 = vrot.lane.b32.xlu0 %v145, 126
    %v181 = vpop.permute.xlu0 %180
    %v186 = vadd.f32 %v166, %v175
    %v187 = vadd.f32 %v167, %v177
    %v188 = vadd.f32 %v168, %v179
    %v189 = vadd.f32 %v169, %v181
    %v190 = vmul.f32 %v127, %v127
    %v191 = vmul.f32 %v128, %v128
    %v192 = vmul.f32 %v129, %v129
    %v193 = vmul.f32 %v130, %v130
    %v194 = vmul.f32 %v186, %v186
    %v195 = vmul.f32 %v187, %v187
    %v196 = vmul.f32 %v188, %v188
    %v197 = vmul.f32 %v189, %v189
    %v202 = vrot.slane %v194, 2
    %v203 = vrot.slane %v195, 2
    %v204 = vsel %vm116, %v202, %v203
    %v205 = vrot.slane %v196, 2
    %v206 = vrot.slane %v197, 2
    %v207 = vsel %vm116, %v205, %v206
    %208 = vrot.lane.b32.xlu0 %v204, 2
    %v209 = vpop.permute.xlu0 %208
    %210 = vrot.lane.b32.xlu0 %v203, 2
    %v211 = vpop.permute.xlu0 %210
    %212 = vrot.lane.b32.xlu0 %v207, 2
    %v213 = vpop.permute.xlu0 %212
    %214 = vrot.lane.b32.xlu0 %v206, 2
    %v215 = vpop.permute.xlu0 %214
    %v220 = vadd.f32 %v190, %v209
    %v221 = vadd.f32 %v191, %v211
    %v222 = vadd.f32 %v192, %v213
    %v223 = vadd.f32 %v193, %v215
    %v224 = vadd.f32 %v220, 1e-06
    %v225 = vadd.f32 %v221, 1e-06
    %v226 = vadd.f32 %v222, 1e-06
    %v227 = vadd.f32 %v223, 1e-06
    %v228 = vrsqrt.pop %v224
    %v229 = vmul.f32 %v224, %v228
    %vm230 = vcmp.eq.f32.partialorder %v224, inf
    %v231 = vsel %vm230, %v224, %v229
    %vm232 = vcmp.eq.f32.partialorder %v224, 0.0
    %v233 = vand.u32 %v224, 2147483648
    %v234 = vsel %vm232, %v233, %v231
    %v235 = vrsqrt.pop %v225
    %v236 = vmul.f32 %v225, %v235
    %vm237 = vcmp.eq.f32.partialorder %v225, inf
    %v238 = vsel %vm237, %v225, %v236
    %vm239 = vcmp.eq.f32.partialorder %v225, 0.0
    %v240 = vand.u32 %v225, 2147483648
    %v241 = vsel %vm239, %v240, %v238
    %v242 = vrsqrt.pop %v226
    %v243 = vmul.f32 %v226, %v242
    %vm244 = vcmp.eq.f32.partialorder %v226, inf
    %v245 = vsel %vm244, %v226, %v243
    %vm246 = vcmp.eq.f32.partialorder %v226, 0.0
    %v247 = vand.u32 %v226, 2147483648
    %v248 = vsel %vm246, %v247, %v245
    %v249 = vrsqrt.pop %v227
    %v250 = vmul.f32 %v227, %v249
    %vm251 = vcmp.eq.f32.partialorder %v227, inf
    %v252 = vsel %vm251, %v227, %v250
    %vm253 = vcmp.eq.f32.partialorder %v227, 0.0
    %v254 = vand.u32 %v227, 2147483648
    %v255 = vsel %vm253, %v254, %v252
    %260 = vrot.lane.b32.xlu0 %v65, 2
    %v261 = vpop.permute.xlu0 %260
    %262 = vrot.lane.b32.xlu0 %v66, 2
    %v263 = vpop.permute.xlu0 %262
    %264 = vrot.lane.b32.xlu0 %v67, 2
    %v265 = vpop.permute.xlu0 %264
    %266 = vrot.lane.b32.xlu0 %v68, 2
    %v267 = vpop.permute.xlu0 %266
    %v272 = vsub.f32 %v65, %v261
    %v273 = vsub.f32 %v66, %v263
    %v274 = vsub.f32 %v67, %v265
    %v275 = vsub.f32 %v68, %v267
    %v276 = vmul.f32 %v272, 2.0
    %v277 = vmul.f32 %v273, 2.0
    %v278 = vmul.f32 %v274, 2.0
    %v279 = vmul.f32 %v275, 2.0
    %v284 = vrot.slane %v276, 1
    %v285 = vrot.slane %v277, 1
    %v286 = vsel %vm97, %v284, %v285
    %v287 = vrot.slane %v278, 1
    %v288 = vrot.slane %v279, 1
    %v289 = vsel %vm97, %v287, %v288
    %v294 = vadd.f32 %v272, %v286
    %v295 = vadd.f32 %v273, %v285
    %v296 = vadd.f32 %v274, %v289
    %v297 = vadd.f32 %v275, %v288
    %v302 = vrot.slane %v272, 2
    %v303 = vrot.slane %v273, 2
    %v304 = vsel %vm116, %v302, %v303
    %v305 = vrot.slane %v274, 2
    %v306 = vrot.slane %v275, 2
    %v307 = vsel %vm116, %v305, %v306
    %v312 = vadd.f32 %v294, %v304
    %v313 = vadd.f32 %v295, %v303
    %v314 = vadd.f32 %v296, %v307
    %v315 = vadd.f32 %v297, %v306
    %v316 = vrot.slane %v65, 6
    %v317 = vrot.slane %v66, 6
    %v318 = vsel %vm131, %v316, %v317
    %v319 = vrot.slane %v67, 6
    %v320 = vrot.slane %v68, 6
    %v321 = vsel %vm131, %v319, %v320
    %v326 = vsub.f32 %v65, %v316
    %v327 = vsub.f32 %v66, %v318
    %v328 = vsub.f32 %v67, %v319
    %v329 = vsub.f32 %v68, %v321
    %v330 = vmul.f32 %v326, 2.0
    %v331 = vmul.f32 %v327, 2.0
    %v332 = vmul.f32 %v328, 2.0
    %v333 = vmul.f32 %v329, 2.0
    %338 = vrot.lane.b32.xlu0 %v330, 127
    %v339 = vpop.permute.xlu0 %338
    %340 = vrot.lane.b32.xlu0 %v331, 127
    %v341 = vpop.permute.xlu0 %340
    %342 = vrot.lane.b32.xlu0 %v332, 127
    %v343 = vpop.permute.xlu0 %342
    %344 = vrot.lane.b32.xlu0 %v333, 127
    %v345 = vpop.permute.xlu0 %344
    %v350 = vadd.f32 %v326, %v339
    %v351 = vadd.f32 %v327, %v341
    %v352 = vadd.f32 %v328, %v343
    %v353 = vadd.f32 %v329, %v345
    %358 = vrot.lane.b32.xlu0 %v326, 126
    %v359 = vpop.permute.xlu0 %358
    %360 = vrot.lane.b32.xlu0 %v327, 126
    %v361 = vpop.permute.xlu0 %360
    %362 = vrot.lane.b32.xlu0 %v328, 126
    %v363 = vpop.permute.xlu0 %362
    %364 = vrot.lane.b32.xlu0 %v329, 126
    %v365 = vpop.permute.xlu0 %364
    %v370 = vadd.f32 %v350, %v359
    %v371 = vadd.f32 %v351, %v361
    %v372 = vadd.f32 %v352, %v363
    %v373 = vadd.f32 %v353, %v365
    %v374 = vmul.f32 %v312, %v312
    %v375 = vmul.f32 %v313, %v313
    %v376 = vmul.f32 %v314, %v314
    %v377 = vmul.f32 %v315, %v315
    %v378 = vmul.f32 %v370, %v370
    %v379 = vmul.f32 %v371, %v371
    %v380 = vmul.f32 %v372, %v372
    %v381 = vmul.f32 %v373, %v373
    %v386 = vrot.slane %v378, 2
    %v387 = vrot.slane %v379, 2
    %v388 = vsel %vm116, %v386, %v387
    %v389 = vrot.slane %v380, 2
    %v390 = vrot.slane %v381, 2
    %v391 = vsel %vm116, %v389, %v390
    %392 = vrot.lane.b32.xlu0 %v388, 2
    %v393 = vpop.permute.xlu0 %392
    %394 = vrot.lane.b32.xlu0 %v387, 2
    %v395 = vpop.permute.xlu0 %394
    %396 = vrot.lane.b32.xlu0 %v391, 2
    %v397 = vpop.permute.xlu0 %396
    %398 = vrot.lane.b32.xlu0 %v390, 2
    %v399 = vpop.permute.xlu0 %398
    %v404 = vadd.f32 %v374, %v393
    %v405 = vadd.f32 %v375, %v395
    %v406 = vadd.f32 %v376, %v397
    %v407 = vadd.f32 %v377, %v399
    %v408 = vadd.f32 %v404, 1e-06
    %v409 = vadd.f32 %v405, 1e-06
    %v410 = vadd.f32 %v406, 1e-06
    %v411 = vadd.f32 %v407, 1e-06
    %v412 = vrsqrt.pop %v408
    %v413 = vmul.f32 %v408, %v412
    %vm414 = vcmp.eq.f32.partialorder %v408, inf
    %v415 = vsel %vm414, %v408, %v413
    %vm416 = vcmp.eq.f32.partialorder %v408, 0.0
    %v417 = vand.u32 %v408, 2147483648
    %v418 = vsel %vm416, %v417, %v415
    %v419 = vrsqrt.pop %v409
    %v420 = vmul.f32 %v409, %v419
    %vm421 = vcmp.eq.f32.partialorder %v409, inf
    %v422 = vsel %vm421, %v409, %v420
    %vm423 = vcmp.eq.f32.partialorder %v409, 0.0
    %v424 = vand.u32 %v409, 2147483648
    %v425 = vsel %vm423, %v424, %v422
    %v426 = vrsqrt.pop %v410
    %v427 = vmul.f32 %v410, %v426
    %vm428 = vcmp.eq.f32.partialorder %v410, inf
    %v429 = vsel %vm428, %v410, %v427
    %vm430 = vcmp.eq.f32.partialorder %v410, 0.0
    %v431 = vand.u32 %v410, 2147483648
    %v432 = vsel %vm430, %v431, %v429
    %v433 = vrsqrt.pop %v411
    %v434 = vmul.f32 %v411, %v433
    %vm435 = vcmp.eq.f32.partialorder %v411, inf
    %v436 = vsel %vm435, %v411, %v434
    %vm437 = vcmp.eq.f32.partialorder %v411, 0.0
    %v438 = vand.u32 %v411, 2147483648
    %v439 = vsel %vm437, %v438, %v436
    %v440 = vsub.f32 %v234, %v418
    %v441 = vsub.f32 %v241, %v425
    %v442 = vsub.f32 %v248, %v432
    %v443 = vsub.f32 %v255, %v439
    %v444 = vand.u32 2147483647, %v440
    %v445 = vand.u32 2147483647, %v441
    %v446 = vand.u32 2147483647, %v442
    %v447 = vand.u32 2147483647, %v443
    %vm448 = vcmask 130064
    %v449 = vsel %vm448, %v444, 0.0
    %v450 = vsel %vm448, %v446, 0.0
    %v451 = vadd.f32 %v449, %v450
    %vm452 = vcmask 128016
    %v453 = vsel %vm452, %v445, 0.0
    %v454 = vsel %vm452, %v447, 0.0
    %v455 = vadd.f32 %v453, %v454
    %v456 = vmul.f32 %v451, 0.0012755102
    %v457 = vmul.f32 %v455, 0.0012755102
    %v458 = vsub.f32 %v61, %v65
    %v459 = vsub.f32 %v62, %v66
    %v460 = vsub.f32 %v63, %v67
    %v461 = vsub.f32 %v64, %v68
    %v462 = vand.u32 2147483647, %v458
    %v463 = vand.u32 2147483647, %v459
    %v464 = vand.u32 2147483647, %v460
    %v465 = vand.u32 2147483647, %v461
    %vm466 = vcmask 130048
    %v467 = vsel %vm466, %v462, 0.0
    %v468 = vsel %vm466, %v464, 0.0
    %v469 = vadd.f32 %v467, %v468
    %v470 = vsel %vm466, %v463, 0.0
    %v471 = vsel %vm466, %v465, 0.0
    %v472 = vadd.f32 %v470, %v471
    %v473 = vmul.f32 %v469, 0.0009765625
    %v474 = vmul.f32 %v472, 0.0009765625
    %v475 = vld [vmem:[#allocation2] sm:$0xff]
    %v476 = vld [vmem:[#allocation2 + $0x8] sm:$0xff]
    %v477 = vadd.f32 %v475, %v473
    %v478 = vadd.f32 %v476, %v474
    %479 = vst.msk [vmem:[#allocation2] sm:$0xff] %vm466, %v477
    %480 = vst.msk [vmem:[#allocation2 + $0x8] sm:$0xff] %vm466, %v478
    %v481 = vld [vmem:[#allocation2] sm:$0xff]
    %v482 = vld [vmem:[#allocation2 + $0x8] sm:$0x3f]
    %485 = vrot.lane.b32.xlu0 %v456, 126
    %v486 = vpop.permute.xlu0 %485
    %487 = vrot.lane.b32.xlu0 %v457, 126
    %v488 = vpop.permute.xlu0 %487
    %v491 = vadd.f32 %v481, %v486
    %v492 = vadd.f32 %v482, %v488
    %vm493 = vcmask 113664
    %494 = vst.msk [vmem:[#allocation2] sm:$0xff] %vm493, %v491
    %vm495 = vcmask 111616
    %496 = vst.msk [vmem:[#allocation2 + $0x8] sm:$0x3f] %vm495, %v492
    // Predicated region
    $region22: #{tpu_custom_call.1} parent=1 // pred_check
      %p497 = pneg %p54
    $region23: #{tpu_custom_call.1} parent=1 // pred_check_branch
      %499 = sbr.rel (%p497) target = $region25
    $region24: #{tpu_custom_call.1} parent=1 // pred_region
      %v500 = vld [vmem:[#allocation2] sm:$0xff]
      %v501 = vld [vmem:[#allocation2 + $0x8] sm:$0xff]
      %v502 = vsel %vm466, %v500, 0.0
      %v503 = vsel %vm466, %v501, 0.0
      %v504 = vadd.f32 %v502, %v503
      %505 = vadd.xlane.f32.xlu0 %v504
      %v506 = vpop.xlane.xlu0 %505
      %v507 = vrot.slane %v506, 4
      %v508 = vadd.f32 %v506, %v507
      %v509 = vrot.slane %v508, 2
      %v510 = vadd.f32 %v508, %v509
      %v511 = vrot.slane %v510, 1
      %v512 = vadd.f32 %v510, %v511
      %s513 = vtos %v512
      %v514 = vstv %s513
      %vm515 = vcmask 0
      %516 = vst.msk [vmem:[#allocation8] sm:$0x1] %vm515, %v514
    $region25: #{tpu_custom_call.1} parent=1 // pred_fallthru
      _
    // Predicated region
    $region26: #{tpu_custom_call.1} parent=1 // pred_check
      _
    $region27: #{tpu_custom_call.1} parent=1 // pred_check_branch
      %518 = sbr.rel (0) target = $region29
    $region28: #{tpu_custom_call.1} parent=1 // pred_region
      %s520 = ssub.s32 16, 16
      %521 = vsyncadd [#allocation5], %s520
      %s523 = sshll.u32 [#allocation8], 4
      %s524 = int_to_ptr.vmem [resolvable:$true] %s523
      %526 = dma.vmem_to_hbm [thread:$0]  %s524, 16, %s2, [#allocation5]
    $region29: #{tpu_custom_call.1} parent=1 // pred_fallthru
      _
    // Predicated region
    $region30: #{tpu_custom_call.1} parent=1 // pred_check
      _
    $region31: #{tpu_custom_call.1} parent=1 // pred_check_branch
      %528 = sbr.rel (0) target = $region33
    $region32: #{tpu_custom_call.1} parent=1 // pred_region
      %529 = dma.done [#allocation5], 16
    $region33: #{tpu_custom_call.1} parent=1 // pred_fallthru
      _
    %530 = vsyncpa [#allocation4], 1
    %531 = vsyncpa [#allocation7], 1
    %532 = vsyncpa [#allocation5], 1

</llo_original>
